<compile_context>
chip_gen: v5e
topology: v5e:2x2
jax: 0.10.0
libtpu: 0.0.40
codegen_flags: <defaults>
</compile_context>

<pallas_src>
import functools
import math

import jax
import jax.numpy as jnp
from jax.experimental import pallas as pl
from jax.experimental.pallas import tpu as pltpu


def _attn_core_kernel(q_ref, k_ref, v_ref, *rest, has_mask: bool, compute_bf16: bool):
    """One (batch, head, q-block) step.

    q_ref  : [tq, hd]     k_ref/v_ref : [Skv, hd]
    mask_ref (if present) : [tq, Skv]
    out_ref : [tq, hd]    probs_ref   : [tq, Skv]
    """
    if has_mask:
        mask_ref, out_ref, probs_ref = rest
    else:
        out_ref, probs_ref = rest

    hd = q_ref.shape[-1]
    scale = 1.0 / math.sqrt(hd)

    if compute_bf16:
        # Fold 1/sqrt(head_dim) into the (small) q tile; bf16 operands -> MXU,
        # f32 accumulation.
        q = (q_ref[...].astype(jnp.float32) * scale).astype(jnp.bfloat16)
        k = k_ref[...].astype(jnp.bfloat16)
        pv_dtype = jnp.bfloat16
    else:
        q = q_ref[...].astype(jnp.float32) * scale
        k = k_ref[...].astype(jnp.float32)
        pv_dtype = jnp.float32

    # QK^T without materializing k.T: contract the lane (head_dim) axes directly.
    scores = jax.lax.dot_general(
        q, k,
        dimension_numbers=(((1,), (1,)), ((), ())),
        preferred_element_type=jnp.float32,
    )                                                       # [tq, Skv] f32

    if has_mask:
        scores = scores + mask_ref[...].astype(jnp.float32)

    # Numerically stable softmax over the kv axis. Fully-masked rows yield a uniform
    # distribution, exactly like torch.softmax of an all--1e9 row.
    m = jnp.max(scores, axis=-1, keepdims=True)
    e = jnp.exp(scores - m)
    denom = jnp.sum(e, axis=-1, keepdims=True)              # >= 1, well conditioned
    inv = pl.reciprocal(denom, approx=True)                  # EUP slot, off the VALU

    # PV matmul on the un-normalized exp tile; normalize the small [tq, hd] result
    # in f32 (better MXU/VPU overlap, avoids a [tq,Skv] divide on the critical path).
    out = jnp.dot(e.astype(pv_dtype), v_ref[...].astype(pv_dtype),
                  preferred_element_type=jnp.float32)        # [tq, hd] f32
    out_ref[...] = (out * inv).astype(out_ref.dtype)
    probs_ref[...] = (e * inv).astype(probs_ref.dtype)


def _vmem_capacity_bytes() -> int:
    """Physical VMEM per TensorCore; conservative fallback if query unavailable."""
    try:
        info = pltpu.get_tpu_info()
        for attr in ("vmem_capacity_bytes", "vmem_size_bytes", "vmem_bytes"):
            v = getattr(info, attr, None)
            if v:
                return int(v)
    except Exception:
        pass
    return 64 * 1024 * 1024  # v7x per-core VMEM (smallest current generation)


def _round_up(x: int, m: int) -> int:
    return -(-x // m) * m


def _select_q_block(sq, skv, hd, *, q_b, kv_b, out_b, mask_b, probs_b, vmem_bytes):
    """Largest q tile whose per-step working set fits ~70% of physical VMEM."""
    budget = int(vmem_bytes * 0.70)
    kv_cost = 2 * 2 * skv * hd * kv_b                       # double-buffered K and V
    per_tq = (2 * hd * (q_b + out_b)                        # 2x-buffered q / out tiles
              + 2 * (mask_b + probs_b) * skv                # 2x-buffered mask / probs tiles
              + 12 * skv)                                   # ~3 f32 [tq,Skv] temporaries
    avail = budget - kv_cost - (2 << 20)                    # misc / scratch slack
    tq_cap = max(8, avail // max(per_tq, 1))
    sq_padded = max(8, _round_up(sq, 8))
    tq = min(512, tq_cap, sq_padded)
    if tq >= sq_padded:
        return sq_padded                                    # single q block
    if tq >= 256:
        return (tq // 128) * 128                            # MXU-height friendly
    if tq >= 16:
        return (tq // 16) * 16                              # bf16 sublane packing
    return max(8, (tq // 8) * 8)


@functools.partial(jax.jit, static_argnames=("num_attention_heads", "use_bf16_matmul",
                                             "cast_mask_to_bf16", "probs_dtype"))
def simple_attention_core(query, key, value, attention_mask, *, num_attention_heads,
                          use_bf16_matmul=True, cast_mask_to_bf16=True,
                          probs_dtype=None):
    """Pallas implementation of SimpleAttentionCore.forward.

    query : [B, Sq, H], key/value : [B, Skv, H]
    attention_mask : None, float [B, Sq, Skv] or [B, 1 or nh, Sq, Skv]
    returns (outputs [B, Sq, H], probs [B, nh, Sq, Skv])

    use_bf16_matmul=True runs both matmuls in bf16 on the MXU with f32 accumulation;
    set False for bit-closer f32 reference behaviour (slower).
    """
    B, Sq, H = query.shape
    _, Skv, _ = key.shape
    nh = num_attention_heads
    assert H % nh == 0
    hd = H // nh

    has_mask = attention_mask is not None
    if has_mask:
        assert jnp.issubdtype(attention_mask.dtype, jnp.floating), \
            "expected float mask with negative values for masked items"
        if cast_mask_to_bf16 and attention_mask.dtype == jnp.float32:
            # 0 / large-negative additive masks are representable in bf16; halves the
            # mask HBM read and its double-buffered VMEM footprint.
            attention_mask = attention_mask.astype(jnp.bfloat16)

    out_dtype = query.dtype
    p_dtype = jnp.dtype(probs_dtype) if probs_dtype is not None else jnp.dtype(out_dtype)

    q_b = query.dtype.itemsize
    kv_b = key.dtype.itemsize
    out_b = jnp.dtype(out_dtype).itemsize
    probs_b = p_dtype.itemsize
    mask_b = attention_mask.dtype.itemsize if has_mask else 0

    vmem_bytes = _vmem_capacity_bytes()
    tq = _select_q_block(Sq, Skv, hd, q_b=q_b, kv_b=kv_b, out_b=out_b,
                         mask_b=mask_b, probs_b=probs_b, vmem_bytes=vmem_bytes)
    nq = -(-Sq // tq)  # ragged last block handled by Pallas padding (rows independent)

    # --- grid order ----------------------------------------------------------
    # If the mask is broadcast over heads, putting the head axis innermost makes the
    # mask block index identical across consecutive steps (DMA'd once per q-block)
    # at the cost of re-fetching K/V per q-block. Pick whichever order moves fewer
    # redundant HBM bytes.
    mask_bcast = has_mask and (attention_mask.ndim == 3 or attention_mask.shape[1] == 1)
    head_inner = False
    if mask_bcast and nh > 1 and nq > 1:
        cost_head_outer = nh * nq * tq * Skv * mask_b + nh * 2 * Skv * hd * kv_b
        cost_head_inner = nq * tq * Skv * mask_b + nq * nh * 2 * Skv * hd * kv_b
        head_inner = cost_head_inner < cost_head_outer

    if head_inner:
        grid = (B, nq, nh)
        def ix(fn):  # adapt canonical (b, h, qi) index maps to grid order (b, qi, h)
            return lambda b, qi, h: fn(b, h, qi)
    else:
        grid = (B, nh, nq)
        def ix(fn):
            return lambda b, h, qi: fn(b, h, qi)

    # --- layouts -------------------------------------------------------------
    lane_aligned = (hd % 128 == 0)
    if lane_aligned:
        # Fast path: head slice selected directly from the hidden axis via BlockSpec
        # (no wrapper reshape/transpose); head_dim stays lane-aligned.
        q_in, k_in, v_in = query, key, value
        q_spec = pl.BlockSpec((None, tq, hd), ix(lambda b, h, qi: (b, qi, h)))
        k_spec = pl.BlockSpec((None, Skv, hd), ix(lambda b, h, qi: (b, 0, h)))
        v_spec = pl.BlockSpec((None, Skv, hd), ix(lambda b, h, qi: (b, 0, h)))
        out_spec = pl.BlockSpec((None, tq, hd), ix(lambda b, h, qi: (b, qi, h)))
        out_struct = jax.ShapeDtypeStruct((B, Sq, H), out_dtype)
    else:
        # Fallback for head_dim not a multiple of 128: explicit head-split layout.
        q_in = query.reshape(B, Sq, nh, hd).transpose(0, 2, 1, 3)
        k_in = key.reshape(B, Skv, nh, hd).transpose(0, 2, 1, 3)
        v_in = value.reshape(B, Skv, nh, hd).transpose(0, 2, 1, 3)
        q_spec = pl.BlockSpec((None, None, tq, hd), ix(lambda b, h, qi: (b, h, qi, 0)))
        k_spec = pl.BlockSpec((None, None, Skv, hd), ix(lambda b, h, qi: (b, h, 0, 0)))
        v_spec = pl.BlockSpec((None, None, Skv, hd), ix(lambda b, h, qi: (b, h, 0, 0)))
        out_spec = pl.BlockSpec((None, None, tq, hd), ix(lambda b, h, qi: (b, h, qi, 0)))
        out_struct = jax.ShapeDtypeStruct((B, nh, Sq, hd), out_dtype)

    in_specs = [q_spec, k_spec, v_spec]
    args = [q_in, k_in, v_in]
    if has_mask:
        if attention_mask.ndim == 3:                         # [B, Sq, Skv]
            in_specs.append(pl.BlockSpec((None, tq, Skv),
                                         ix(lambda b, h, qi: (b, qi, 0))))
        elif attention_mask.shape[1] == 1:                   # [B, 1, Sq, Skv]
            in_specs.append(pl.BlockSpec((None, None, tq, Skv),
                                         ix(lambda b, h, qi: (b, 0, qi, 0))))
        else:                                                # [B, nh, Sq, Skv]
            in_specs.append(pl.BlockSpec((None, None, tq, Skv),
                                         ix(lambda b, h, qi: (b, h, qi, 0))))
        args.append(attention_mask)

    out_specs = [
        out_spec,
        pl.BlockSpec((None, None, tq, Skv), ix(lambda b, h, qi: (b, h, qi, 0))),
    ]
    out_shape = [out_struct, jax.ShapeDtypeStruct((B, nh, Sq, Skv), p_dtype)]

    # --- compiler params & cost estimate -------------------------------------
    vmem_limit = int(vmem_bytes * 0.85)   # tq was budgeted to ~70%; leave headroom
    flops = 4 * B * nh * Sq * Skv * hd
    bytes_accessed = (query.size * q_b + key.size * kv_b + value.size * kv_b
                      + (attention_mask.size * mask_b if has_mask else 0)
                      + B * Sq * H * out_b + B * nh * Sq * Skv * probs_b)
    cost = pl.CostEstimate(flops=flops, transcendentals=B * nh * Sq * Skv,
                           bytes_accessed=int(bytes_accessed))

    kernel = functools.partial(_attn_core_kernel, has_mask=has_mask,
                               compute_bf16=use_bf16_matmul)
    outputs, probs = pl.pallas_call(
        kernel,
        grid=grid,
        in_specs=in_specs,
        out_specs=out_specs,
        out_shape=out_shape,
        compiler_params=pltpu.CompilerParams(
            dimension_semantics=("parallel", "parallel", "parallel"),
            vmem_limit_bytes=vmem_limit),
        cost_estimate=cost,
    )(*args)

    if not lane_aligned:
        outputs = outputs.transpose(0, 2, 1, 3).reshape(B, Sq, H)
    return outputs, probs


def _reference(query, key, value, attention_mask, num_heads):
    """Plain-JAX reference mirroring the PyTorch module."""
    B, Sq, H = query.shape
    Skv = key.shape[1]
    hd = H // num_heads
    q = query.reshape(B, Sq, num_heads, hd).transpose(0, 2, 1, 3)
    k = key.reshape(B, Skv, num_heads, hd).transpose(0, 2, 1, 3)
    v = value.reshape(B, Skv, num_heads, hd).transpose(0, 2, 1, 3)
    scores = jnp.einsum("bhqd,bhkd->bhqk", q, k) / math.sqrt(hd)
    if attention_mask is not None:
        m = attention_mask if attention_mask.ndim == 4 else attention_mask[:, None, :, :]
        scores = scores + m
    probs = jax.nn.softmax(scores, axis=-1)
    out = jnp.einsum("bhqk,bhkd->bhqd", probs, v).transpose(0, 2, 1, 3).reshape(B, Sq, H)
    return out, probs


def _check(out, probs, ref_out, ref_probs, tol):
    assert out.shape == ref_out.shape and probs.shape == ref_probs.shape
    assert jnp.allclose(out, ref_out, rtol=tol, atol=tol), \
        float(jnp.max(jnp.abs(out - ref_out)))
    assert jnp.allclose(probs, ref_probs, rtol=tol, atol=tol), \
        float(jnp.max(jnp.abs(probs - ref_probs)))


if __name__ == "__main__":
    key0 = jax.random.PRNGKey(0)

    # ---- test 1: lane-aligned fast path (head_dim=128), 3-D broadcast mask ----
    B, S, NH, HD = 2, 8, 2, 128
    HIDDEN = NH * HD
    kq, kk, kv, km = jax.random.split(key0, 4)
    q = jax.random.normal(kq, (B, S, HIDDEN), dtype=jnp.float32)
    k = jax.random.normal(kk, (B, S, HIDDEN), dtype=jnp.float32)
    v = jax.random.normal(kv, (B, S, HIDDEN), dtype=jnp.float32)
    qi = jnp.arange(S)[:, None]
    kj = jnp.arange(S)[None, :]
    causal = jnp.where(kj <= qi, 0.0, -1e9).astype(jnp.float32)
    mask3 = jnp.broadcast_to(causal, (B, S, S))

    out, probs = simple_attention_core(q, k, v, mask3, num_attention_heads=NH)
    out, probs = jax.block_until_ready(out), jax.block_until_ready(probs)
    ref_out, ref_probs = _reference(q, k, v, mask3, NH)
    _check(out, probs, ref_out, ref_probs, tol=2.5e-2)

    # ---- test 2: head-split fallback (head_dim=64), per-head 4-D mask ----
    B2, Sq2, Skv2, NH2, HD2 = 2, 16, 24, 2, 64
    H2 = NH2 * HD2
    k1, k2, k3, k4 = jax.random.split(jax.random.PRNGKey(1), 4)
    q2 = jax.random.normal(k1, (B2, Sq2, H2), dtype=jnp.float32)
    k2_ = jax.random.normal(k2, (B2, Skv2, H2), dtype=jnp.float32)
    v2 = jax.random.normal(k3, (B2, Skv2, H2), dtype=jnp.float32)
    masked = jax.random.bernoulli(k4, 0.3, (B2, NH2, Sq2, Skv2))
    mask4 = jnp.where(masked, -1e9, 0.0).astype(jnp.float32)

    out2, probs2 = simple_attention_core(q2, k2_, v2, mask4, num_attention_heads=NH2)
    out2, probs2 = jax.block_until_ready(out2), jax.block_until_ready(probs2)
    ref_out2, ref_probs2 = _reference(q2, k2_, v2, mask4, NH2)
    _check(out2, probs2, ref_out2, ref_probs2, tol=2.5e-2)

    # ---- test 3: no mask ----
    out3, probs3 = simple_attention_core(q2, k2_, v2, None, num_attention_heads=NH2)
    out3, probs3 = jax.block_until_ready(out3), jax.block_until_ready(probs3)
    ref_out3, ref_probs3 = _reference(q2, k2_, v2, None, NH2)
    _check(out3, probs3, ref_out3, ref_probs3, tol=2.5e-2)

    print("KERNEL_OK")
</pallas_src>

<mosaic_0001>
module attributes {stable_mosaic.version = 11 : i64} {
  func.func @_attn_core_kernel(%arg0: i32, %arg1: i32, %arg2: i32, %arg3: memref<1x8x128xf32, #tpu.memory_space<vmem>>, %arg4: memref<1x8x128xf32, #tpu.memory_space<vmem>>, %arg5: memref<1x8x128xf32, #tpu.memory_space<vmem>>, %arg6: memref<1x8x8xbf16, #tpu.memory_space<vmem>>, %arg7: memref<1x8x128xf32, #tpu.memory_space<vmem>>, %arg8: memref<1x1x8x8xf32, #tpu.memory_space<vmem>>) attributes {dimension_semantics = [#tpu.dimension_semantics<parallel>, #tpu.dimension_semantics<parallel>, #tpu.dimension_semantics<parallel>], iteration_bounds = array<i64: 2, 2, 1>, scalar_prefetch = 0 : i64, scratch_operands = 0 : i64, tpu.core_type = #tpu.core_type<tc>, window_params = [{transform_indices = @transform_0, window_bounds = array<i64: 1, 8, 128>}, {transform_indices = @transform_1, window_bounds = array<i64: 1, 8, 128>}, {transform_indices = @transform_2, window_bounds = array<i64: 1, 8, 128>}, {transform_indices = @transform_3, window_bounds = array<i64: 1, 8, 8>}, {transform_indices = @transform_4, window_bounds = array<i64: 1, 8, 128>}, {transform_indices = @transform_5, window_bounds = array<i64: 1, 1, 8, 8>}]} {
    %c0 = arith.constant 0 : index
    %c0_0 = arith.constant 0 : index
    %c0_1 = arith.constant 0 : index
    %0 = vector.load %arg3[%c0, %c0_0, %c0_1] : memref<1x8x128xf32, #tpu.memory_space<vmem>>, vector<1x8x128xf32>
    %1 = vector.shape_cast %0 : vector<1x8x128xf32> to vector<8x128xf32>
    %cst = arith.constant 0.0883883461 : f32
    %2 = vector.broadcast %cst : f32 to vector<8x128xf32>
    %3 = arith.mulf %1, %2 : vector<8x128xf32>
    %4 = arith.truncf %3 : vector<8x128xf32> to vector<8x128xbf16>
    %c0_2 = arith.constant 0 : index
    %c0_3 = arith.constant 0 : index
    %c0_4 = arith.constant 0 : index
    %5 = vector.load %arg4[%c0_2, %c0_3, %c0_4] : memref<1x8x128xf32, #tpu.memory_space<vmem>>, vector<1x8x128xf32>
    %6 = vector.shape_cast %5 : vector<1x8x128xf32> to vector<8x128xf32>
    %7 = arith.truncf %6 : vector<8x128xf32> to vector<8x128xbf16>
    %cst_5 = arith.constant dense<0.000000e+00> : vector<8x8xf32>
    %8 = tpu.matmul %4, %7, %cst_5 {dimension_numbers = #tpu.dot_dimension_numbers<[1], [1], [0], [0], [0, 0, 1, 0], [], []>} : vector<8x128xbf16>, vector<8x128xbf16>, vector<8x8xf32> -> vector<8x8xf32>
    %c0_6 = arith.constant 0 : index
    %c0_7 = arith.constant 0 : index
    %c0_8 = arith.constant 0 : index
    %9 = vector.load %arg6[%c0_6, %c0_7, %c0_8] : memref<1x8x8xbf16, #tpu.memory_space<vmem>>, vector<1x8x8xbf16>
    %10 = vector.shape_cast %9 : vector<1x8x8xbf16> to vector<8x8xbf16>
    %11 = arith.extf %10 : vector<8x8xbf16> to vector<8x8xf32>
    %12 = arith.addf %8, %11 : vector<8x8xf32>
    %cst_9 = arith.constant dense<0xFF800000> : vector<8xf32>
    %13 = vector.multi_reduction <maximumf>, %12, %cst_9 [1] : vector<8x8xf32> to vector<8xf32>
    %14 = vector.shape_cast %13 : vector<8xf32> to vector<8x1xf32>
    %15 = vector.broadcast %14 : vector<8x1xf32> to vector<8x8xf32>
    %16 = arith.subf %12, %15 : vector<8x8xf32>
    %17 = math.exp %16 : vector<8x8xf32>
    %cst_10 = arith.constant dense<0.000000e+00> : vector<8xf32>
    %18 = vector.multi_reduction <add>, %17, %cst_10 [1] : vector<8x8xf32> to vector<8xf32>
    %19 = vector.shape_cast %18 : vector<8xf32> to vector<8x1xf32>
    %20 = tpu.reciprocal %19 {approx = true} : vector<8x1xf32> -> vector<8x1xf32>
    %21 = arith.truncf %17 : vector<8x8xf32> to vector<8x8xbf16>
    %c0_11 = arith.constant 0 : index
    %c0_12 = arith.constant 0 : index
    %c0_13 = arith.constant 0 : index
    %22 = vector.load %arg5[%c0_11, %c0_12, %c0_13] : memref<1x8x128xf32, #tpu.memory_space<vmem>>, vector<1x8x128xf32>
    %23 = vector.shape_cast %22 : vector<1x8x128xf32> to vector<8x128xf32>
    %24 = arith.truncf %23 : vector<8x128xf32> to vector<8x128xbf16>
    %cst_14 = arith.constant dense<0.000000e+00> : vector<8x128xf32>
    %25 = tpu.matmul %21, %24, %cst_14 {dimension_numbers = #tpu.dot_dimension_numbers<[1], [0], [0], [1], [0, 0, 1, 1], [], []>} : vector<8x8xbf16>, vector<8x128xbf16>, vector<8x128xf32> -> vector<8x128xf32>
    %26 = vector.broadcast %20 : vector<8x1xf32> to vector<8x128xf32>
    %27 = arith.mulf %25, %26 : vector<8x128xf32>
    %c0_15 = arith.constant 0 : index
    %c0_16 = arith.constant 0 : index
    %c0_17 = arith.constant 0 : index
    %28 = vector.load %arg7[%c0_15, %c0_16, %c0_17] : memref<1x8x128xf32, #tpu.memory_space<vmem>>, vector<1x8x128xf32>
    %29 = vector.shape_cast %28 : vector<1x8x128xf32> to vector<8x128xf32>
    %30 = vector.shape_cast %27 : vector<8x128xf32> to vector<1x8x128xf32>
    tpu.vector_store %arg7[%c0_15, %c0_16, %c0_17], %30 {strides = array<i32>} : memref<1x8x128xf32, #tpu.memory_space<vmem>>, vector<1x8x128xf32>,
    %31 = vector.broadcast %20 : vector<8x1xf32> to vector<8x8xf32>
    %32 = arith.mulf %17, %31 : vector<8x8xf32>
    %c0_18 = arith.constant 0 : index
    %c0_19 = arith.constant 0 : index
    %c0_20 = arith.constant 0 : index
    %c0_21 = arith.constant 0 : index
    %33 = vector.load %arg8[%c0_18, %c0_19, %c0_20, %c0_21] : memref<1x1x8x8xf32, #tpu.memory_space<vmem>>, vector<1x1x8x8xf32>
    %34 = vector.shape_cast %33 : vector<1x1x8x8xf32> to vector<8x8xf32>
    %35 = vector.shape_cast %32 : vector<8x8xf32> to vector<1x1x8x8xf32>
    tpu.vector_store %arg8[%c0_18, %c0_19, %c0_20, %c0_21], %35 {strides = array<i32>} : memref<1x1x8x8xf32, #tpu.memory_space<vmem>>, vector<1x1x8x8xf32>,
    return
  }
  func.func @transform_0(%arg0: i32, %arg1: i32, %arg2: i32) -> (i32, i32, i32) {
    %c0_i32 = arith.constant 0 : i32
    return %arg0, %arg2, %arg1 : i32, i32, i32
  }
  func.func @transform_1(%arg0: i32, %arg1: i32, %arg2: i32) -> (i32, i32, i32) {
    %c0_i32 = arith.constant 0 : i32
    %c0_i32_0 = arith.constant 0 : i32
    return %arg0, %c0_i32, %arg1 : i32, i32, i32
  }
  func.func @transform_2(%arg0: i32, %arg1: i32, %arg2: i32) -> (i32, i32, i32) {
    %c0_i32 = arith.constant 0 : i32
    %c0_i32_0 = arith.constant 0 : i32
    return %arg0, %c0_i32, %arg1 : i32, i32, i32
  }
  func.func @transform_3(%arg0: i32, %arg1: i32, %arg2: i32) -> (i32, i32, i32) {
    %c0_i32 = arith.constant 0 : i32
    %c0_i32_0 = arith.constant 0 : i32
    return %arg0, %arg2, %c0_i32 : i32, i32, i32
  }
  func.func @transform_4(%arg0: i32, %arg1: i32, %arg2: i32) -> (i32, i32, i32) {
    %c0_i32 = arith.constant 0 : i32
    return %arg0, %arg2, %arg1 : i32, i32, i32
  }
  func.func @transform_5(%arg0: i32, %arg1: i32, %arg2: i32) -> (i32, i32, i32, i32) {
    %c0_i32 = arith.constant 0 : i32
    %c0_i32_0 = arith.constant 0 : i32
    return %arg0, %arg1, %arg2, %c0_i32 : i32, i32, i32, i32
  }
}

</mosaic_0001>

<llo_original>
// kernel: simple_attention_core.1
$region0: #{simple_attention_core.1}
  #allocation0 [shape = 'u32[]', space=smem, size = 0x4, offset = 0x4, fixed_abs, tag = 'smem constant byte address 0x4 - core index']
  #allocation1 [shape = 'u32[72,128]{1,0:T(1,128)}', space=vmem, size = 0x9000, scoped, tag = 'internal scratch']
  %s0 = inlined_call_operand.hbm [shape: f32[2,8,256], index: 0, kind: input, shape index: {}]
  %s1 = inlined_call_operand.hbm [shape: f32[2,8,256], index: 1, kind: input, shape index: {}]
  %s2 = inlined_call_operand.hbm [shape: f32[2,8,256], index: 2, kind: input, shape index: {}]
  %s3 = inlined_call_operand.vmem [shape: bf16[2,8,8], index: 3, kind: input, shape index: {}]
  %s4 = inlined_call_operand.hbm [shape: f32[2,8,256], index: 4, kind: output, shape index: {0}]
  %s5 = inlined_call_operand.hbm [shape: f32[2,2,8,8], index: 5, kind: output, shape index: {1}]
  %6 = xla_tuple %s4, %s5
  %s7 = sld [smem:[#allocation0]]
  $region69: #{simple_attention_core.1} parent=0
    _
  %s9 = ssub.s32 1, %s7
  %s10 = scalar_select 0, %s9, %s7
  $region1: #{simple_attention_core.1} parent=0
    #allocation2 [shape = 'u8[8192]{0}', space=vmem, size = 0x2000, scoped, tag = 'input window, operand 0']
    #allocation3 [shape = 's32[2]{0}', space=sflag, size = 0x8, scoped, tag = 'scoped memory for simple_attention_core.1']
    #allocation4 [shape = 's32[2]{0}', space=sflag, size = 0x8, scoped, tag = 'scoped memory for simple_attention_core.1']
    #allocation5 [shape = 'u8[8192]{0}', space=vmem, size = 0x2000, scoped, tag = 'input window, operand 1']
    #allocation6 [shape = 's32[2]{0}', space=sflag, size = 0x8, scoped, tag = 'scoped memory for simple_attention_core.1']
    #allocation7 [shape = 'u8[8192]{0}', space=vmem, size = 0x2000, scoped, tag = 'input window, operand 2']
    #allocation8 [shape = 'u8[8192]{0}', space=vmem, size = 0x2000, scoped, tag = 'output window, operand 0']
    #allocation9 [shape = 'u8[8192]{0}', space=vmem, size = 0x2000, scoped, tag = 'output window, operand 1']
    #allocation10 [shape = 's32[2]{0}', space=sflag, size = 0x8, scoped, tag = 'scoped memory for simple_attention_core.1']
    %11 = vsyncpa [#allocation3], 0
    %s12 = scalar_lea.sflag [#allocation3], 1
    %13 = vsyncpa %s12, 0
    %14 = vsyncpa [#allocation6], 0
    %s15 = scalar_lea.sflag [#allocation6], 1
    %16 = vsyncpa %s15, 0
    %17 = vsyncpa [#allocation4], 0
    %s18 = scalar_lea.sflag [#allocation4], 1
    %19 = vsyncpa %s18, 0
    %20 = vsyncpa [#allocation10], 0
    %s21 = scalar_lea.sflag [#allocation10], 1
    %22 = vsyncpa %s21, 0
    loop: start=0, step=1, limit=6
    $region2: #{simple_attention_core.1} parent=1 // loop_pre_header
      _
    $region3: #{simple_attention_core.1} parent=1 // loop_header
      %s24 = sphi 0, %s28
      %p25 = scmp.ge.s32.totalorder %s24, 6
      %s31 = sphi 0, %s50
      %s32 = sphi 0, %s46
      %s33 = sphi 0, %s42
      %s34 = sphi 0, %s31
      %s35 = sphi 0, %s32
      %s36 = sphi 0, %s33
      %s37 = sphi 0, %s34
      %s38 = sphi 0, %s35
      %s39 = sphi 0, %s36
      %s57 = sphi 0, %s59
      %s60 = sphi 0, %s57
      %s61 = sphi 0, %s60
      %s77 = sphi 0, %s61
      %s85 = sphi 0, %s87
      %s88 = sphi 0, %s85
      %s89 = sphi 0, %s88
      %s105 = sphi 0, %s89
      %s113 = sphi 0, %s115
      %s116 = sphi 0, %s113
      %s117 = sphi 0, %s116
      %s133 = sphi 0, %s117
      %s141 = sphi 0, %s143
      %s144 = sphi 0, %s141
      %s145 = sphi 0, %s144
      %s161 = sphi 0, %s145
      %s171 = sphi 0, %s173
      %s174 = sphi 0, %s171
      %s175 = sphi 0, %s174
      %s191 = sphi 0, %s175
      %s201 = sphi 0, %s203
      %s204 = sphi 0, %s201
      %s205 = sphi 0, %s204
      %s221 = sphi 0, %s205
    $region4: #{simple_attention_core.1} parent=1 // loop_header_branch
      %27 = sbr.rel (%p25) target = $region8
    $region5: #{simple_attention_core.1} parent=1 // loop_body
      %s29 = ssub.s32 %s24, 1
      %s30 = ssub.s32 %s24, 2
      %s40 = sadd.s32 1, %s33
      %p41 = scmp.ge.s32.totalorder %s40, 1
      %s42 = scalar_select %p41, 0, %s40
      %s43 = sadd.s32 1, %s32
      %s44 = scalar_select %p41, %s43, %s32
      %p45 = scmp.ge.s32.totalorder %s44, 2
      %s46 = scalar_select %p45, 0, %s44
      %s47 = sadd.s32 1, %s31
      %s48 = scalar_select %p45, %s47, %s31
      %p49 = scmp.ge.s32.totalorder %s48, 2
      %s50 = scalar_select %p49, 0, %s48
      %s51 = ssub.s32 %s31, %s50
      %s52 = ssub.s32 %s33, %s42
      %s53 = sor.u32 %s51, %s52
      %s54 = ssub.s32 %s32, %s46
      %s55 = sor.u32 %s53, %s54
      %p56 = scmp.eq.s32.totalorder %s55, 0
      %s58 = sadd.s32 %s57, 1
      %s59 = scalar_select %p56, %s57, %s58
      %p62 = pneg %p56
      %p63 = scmp.eq.s32.totalorder %s24, 3
      %p64 = por %p62, %p63
      %p65 = scmp.ne.s32.totalorder %s57, %s60
      %p66 = scmp.eq.s32.totalorder %s24, 0
      %p67 = por %p65, %p66
      %p68 = scmp.ne.s32.totalorder %s57, %s60
      %p69 = scmp.eq.s32.totalorder %s29, 3
      %p70 = por %p68, %p69
      %p71 = scmp.ne.s32.totalorder %s60, %s61
      %p72 = scmp.eq.s32.totalorder %s29, 0
      %p73 = por %p71, %p72
      %p74 = scmp.ne.s32.totalorder %s60, %s61
      %p75 = scmp.eq.s32.totalorder %s30, 3
      %p76 = por %p74, %p75
      %p78 = scmp.ne.s32.totalorder %s61, %s77
      %p79 = scmp.eq.s32.totalorder %s30, 0
      %p80 = por %p78, %p79
      %s81 = ssub.s32 %s31, %s50
      %s82 = ssub.s32 %s32, %s46
      %s83 = sor.u32 %s81, %s82
      %p84 = scmp.eq.s32.totalorder %s83, 0
      %s86 = sadd.s32 %s85, 1
      %s87 = scalar_select %p84, %s85, %s86
      %p90 = pneg %p84
      %p91 = scmp.eq.s32.totalorder %s24, 3
      %p92 = por %p90, %p91
      %p93 = scmp.ne.s32.totalorder %s85, %s88
      %p94 = scmp.eq.s32.totalorder %s24, 0
      %p95 = por %p93, %p94
      %p96 = scmp.ne.s32.totalorder %s85, %s88
      %p97 = scmp.eq.s32.totalorder %s29, 3
      %p98 = por %p96, %p97
      %p99 = scmp.ne.s32.totalorder %s88, %s89
      %p100 = scmp.eq.s32.totalorder %s29, 0
      %p101 = por %p99, %p100
      %p102 = scmp.ne.s32.totalorder %s88, %s89
      %p103 = scmp.eq.s32.totalorder %s30, 3
      %p104 = por %p102, %p103
      %p106 = scmp.ne.s32.totalorder %s89, %s105
      %p107 = scmp.eq.s32.totalorder %s30, 0
      %p108 = por %p106, %p107
      %s109 = ssub.s32 %s31, %s50
      %s110 = ssub.s32 %s32, %s46
      %s111 = sor.u32 %s109, %s110
      %p112 = scmp.eq.s32.totalorder %s111, 0
      %s114 = sadd.s32 %s113, 1
      %s115 = scalar_select %p112, %s113, %s114
      %p118 = pneg %p112
      %p119 = scmp.eq.s32.totalorder %s24, 3
      %p120 = por %p118, %p119
      %p121 = scmp.ne.s32.totalorder %s113, %s116
      %p122 = scmp.eq.s32.totalorder %s24, 0
      %p123 = por %p121, %p122
      %p124 = scmp.ne.s32.totalorder %s113, %s116
      %p125 = scmp.eq.s32.totalorder %s29, 3
      %p126 = por %p124, %p125
      %p127 = scmp.ne.s32.totalorder %s116, %s117
      %p128 = scmp.eq.s32.totalorder %s29, 0
      %p129 = por %p127, %p128
      %p130 = scmp.ne.s32.totalorder %s116, %s117
      %p131 = scmp.eq.s32.totalorder %s30, 3
      %p132 = por %p130, %p131
      %p134 = scmp.ne.s32.totalorder %s117, %s133
      %p135 = scmp.eq.s32.totalorder %s30, 0
      %p136 = por %p134, %p135
      %s137 = ssub.s32 %s31, %s50
      %s138 = ssub.s32 %s33, %s42
      %s139 = sor.u32 %s137, %s138
      %p140 = scmp.eq.s32.totalorder %s139, 0
      %s142 = sadd.s32 %s141, 1
      %s143 = scalar_select %p140, %s141, %s142
      %p146 = pneg %p140
      %p147 = scmp.eq.s32.totalorder %s24, 3
      %p148 = por %p146, %p147
      %p149 = scmp.ne.s32.totalorder %s141, %s144
      %p150 = scmp.eq.s32.totalorder %s24, 0
      %p151 = por %p149, %p150
      %p152 = scmp.ne.s32.totalorder %s141, %s144
      %p153 = scmp.eq.s32.totalorder %s29, 3
      %p154 = por %p152, %p153
      %p155 = scmp.ne.s32.totalorder %s144, %s145
      %p156 = scmp.eq.s32.totalorder %s29, 0
      %p157 = por %p155, %p156
      %p158 = scmp.ne.s32.totalorder %s144, %s145
      %p159 = scmp.eq.s32.totalorder %s30, 3
      %p160 = por %p158, %p159
      %p162 = scmp.ne.s32.totalorder %s145, %s161
      %p163 = scmp.eq.s32.totalorder %s30, 0
      %p164 = por %p162, %p163
      %s165 = ssub.s32 %s31, %s50
      %s166 = ssub.s32 %s33, %s42
      %s167 = sor.u32 %s165, %s166
      %s168 = ssub.s32 %s32, %s46
      %s169 = sor.u32 %s167, %s168
      %p170 = scmp.eq.s32.totalorder %s169, 0
      %s172 = sadd.s32 %s171, 1
      %s173 = scalar_select %p170, %s171, %s172
      %p176 = pneg %p170
      %p177 = scmp.eq.s32.totalorder %s24, 3
      %p178 = por %p176, %p177
      %p179 = scmp.ne.s32.totalorder %s171, %s174
      %p180 = scmp.eq.s32.totalorder %s24, 0
      %p181 = por %p179, %p180
      %p182 = scmp.ne.s32.totalorder %s171, %s174
      %p183 = scmp.eq.s32.totalorder %s29, 3
      %p184 = por %p182, %p183
      %p185 = scmp.ne.s32.totalorder %s174, %s175
      %p186 = scmp.eq.s32.totalorder %s29, 0
      %p187 = por %p185, %p186
      %p188 = scmp.ne.s32.totalorder %s174, %s175
      %p189 = scmp.eq.s32.totalorder %s30, 3
      %p190 = por %p188, %p189
      %p192 = scmp.ne.s32.totalorder %s175, %s191
      %p193 = scmp.eq.s32.totalorder %s30, 0
      %p194 = por %p192, %p193
      %s195 = ssub.s32 %s31, %s50
      %s196 = ssub.s32 %s32, %s46
      %s197 = sor.u32 %s195, %s196
      %s198 = ssub.s32 %s33, %s42
      %s199 = sor.u32 %s197, %s198
      %p200 = scmp.eq.s32.totalorder %s199, 0
      %s202 = sadd.s32 %s201, 1
      %s203 = scalar_select %p200, %s201, %s202
      %p206 = pneg %p200
      %p207 = scmp.eq.s32.totalorder %s24, 3
      %p208 = por %p206, %p207
      %p209 = scmp.ne.s32.totalorder %s201, %s204
      %p210 = scmp.eq.s32.totalorder %s24, 0
      %p211 = por %p209, %p210
      %p212 = scmp.ne.s32.totalorder %s201, %s204
      %p213 = scmp.eq.s32.totalorder %s29, 3
      %p214 = por %p212, %p213
      %p215 = scmp.ne.s32.totalorder %s204, %s205
      %p216 = scmp.eq.s32.totalorder %s29, 0
      %p217 = por %p215, %p216
      %p218 = scmp.ne.s32.totalorder %s204, %s205
      %p219 = scmp.eq.s32.totalorder %s30, 3
      %p220 = por %p218, %p219
      %p222 = scmp.ne.s32.totalorder %s205, %s221
      %p223 = scmp.eq.s32.totalorder %s30, 0
      %p224 = por %p222, %p223
      %p225 = scmp.le.s32.totalorder 1, %s24
      %p226 = scmp.lt.s32.totalorder %s24, 5
      %p227 = pnand %p225, %p226
      %p228 = pneg %p227
      // Predicated region
      $region9: #{simple_attention_core.1} parent=5 // pred_check
        _
      $region10: #{simple_attention_core.1} parent=5 // pred_check_branch
        %230 = sbr.rel (%p227) target = $region12
      $region11: #{simple_attention_core.1} parent=5 // pred_region
        %s231 = ssub.s32 %s24, 1
      $region12: #{simple_attention_core.1} parent=5 // pred_fallthru
        _
      %p232 = scmp.lt.s32.totalorder %s24, 4
      // Predicated region
      $region13: #{simple_attention_core.1} parent=5 // pred_check
        %p233 = pneg %p232
      $region14: #{simple_attention_core.1} parent=5 // pred_check_branch
        %235 = sbr.rel (%p233) target = $region16
      $region15: #{simple_attention_core.1} parent=5 // pred_region
        // Predicated region
        $region17: #{simple_attention_core.1} parent=15 // pred_check
          %p236 = pneg %p67
        $region18: #{simple_attention_core.1} parent=15 // pred_check_branch
          %238 = sbr.rel (%p236) target = $region20
        $region19: #{simple_attention_core.1} parent=15 // pred_region
          %s239 = sand.u32 %s57, 1
          %s240 = scalar_lea.sflag [#allocation3], %s239
          %s241 = sand.u32 %s57, 1
          %s242 = smul.addr %s241, 8
          %s243 = scalar_lea.vmem [#allocation2], %s242
          %245 = vsyncadd %s240, 0
          %s246 = smul.addr %s33, 2
          %s247 = sadd.s32 %s32, %s246
          %s248 = smul.addr %s31, 2
          %s249 = sadd.s32 %s247, %s248
          %s250 = smul.addr %s249, 8
          %s251 = scalar_lea.hbm %s0, %s250
          %s253 = sshll.u32 %s251, 4
          %s254 = int_to_ptr.hbm [resolvable:$true] %s253
          %s255 = sshll.u32 %s243, 4
          %s256 = int_to_ptr.vmem [resolvable:$true] %s255
          %258 = dma.hbm_to_vmem [thread:$0]  %s254, 128, %s256, %s240
        $region20: #{simple_attention_core.1} parent=15 // pred_fallthru
          _
        // Predicated region
        $region21: #{simple_attention_core.1} parent=15 // pred_check
          %p259 = pneg %p95
        $region22: #{simple_attention_core.1} parent=15 // pred_check_branch
          %261 = sbr.rel (%p259) target = $region24
        $region23: #{simple_attention_core.1} parent=15 // pred_region
          %s262 = sand.u32 %s24, 1
          %s263 = scalar_lea.sflag [#allocation6], %s262
          %s264 = sand.u32 %s85, 1
          %s265 = smul.addr %s264, 8
          %s266 = scalar_lea.vmem [#allocation5], %s265
          %268 = vsyncadd %s263, 0
          %s269 = smul.addr %s31, 2
          %s270 = sadd.s32 %s32, %s269
          %s271 = smul.addr %s270, 8
          %s272 = scalar_lea.hbm %s1, %s271
          %s274 = sshll.u32 %s272, 4
          %s275 = int_to_ptr.hbm [resolvable:$true] %s274
          %s276 = sshll.u32 %s266, 4
          %s277 = int_to_ptr.vmem [resolvable:$true] %s276
          %279 = dma.hbm_to_vmem [thread:$0]  %s275, 128, %s277, %s263
        $region24: #{simple_attention_core.1} parent=15 // pred_fallthru
          _
        // Predicated region
        $region25: #{simple_attention_core.1} parent=15 // pred_check
          %p280 = pneg %p123
        $region26: #{simple_attention_core.1} parent=15 // pred_check_branch
          %282 = sbr.rel (%p280) target = $region28
        $region27: #{simple_attention_core.1} parent=15 // pred_region
          %s283 = sand.u32 %s24, 1
          %s284 = scalar_lea.sflag [#allocation6], %s283
          %s285 = sand.u32 %s113, 1
          %s286 = smul.addr %s285, 8
          %s287 = scalar_lea.vmem [#allocation7], %s286
          %289 = vsyncadd %s284, 0
          %s290 = smul.addr %s31, 2
          %s291 = sadd.s32 %s32, %s290
          %s292 = smul.addr %s291, 8
          %s293 = scalar_lea.hbm %s2, %s292
          %s295 = sshll.u32 %s293, 4
          %s296 = int_to_ptr.hbm [resolvable:$true] %s295
          %s297 = sshll.u32 %s287, 4
          %s298 = int_to_ptr.vmem [resolvable:$true] %s297
          %300 = dma.hbm_to_vmem [thread:$0]  %s296, 128, %s298, %s284
        $region28: #{simple_attention_core.1} parent=15 // pred_fallthru
          _
        // Predicated region
        $region29: #{simple_attention_core.1} parent=15 // pred_check
          %p301 = pneg %p151
        $region30: #{simple_attention_core.1} parent=15 // pred_check_branch
          %303 = sbr.rel (%p301) target = $region32
        $region31: #{simple_attention_core.1} parent=15 // pred_region
          %p304 = scmp.lt.s32.totalorder %s31, 1
          %s305 = scalar_select %p304, %s31, 1
          %p306 = scmp.lt.s32.totalorder %s33, 0
          %s307 = scalar_select %p306, %s33, 0
          %s308 = sadd.s32 %s307, %s305
          %s309 = smul.addr %s308, 4
          %s310 = scalar_lea.vmem %s3, %s309
        $region32: #{simple_attention_core.1} parent=15 // pred_fallthru
          _
      $region16: #{simple_attention_core.1} parent=5 // pred_fallthru
        _
      %p311 = scmp.le.s32.totalorder 1, %s24
      %p312 = scmp.lt.s32.totalorder %s24, 5
      %p313 = pnand %p311, %p312
      %p314 = pneg %p313
      // Predicated region
      $region33: #{simple_attention_core.1} parent=5 // pred_check
        _
      $region34: #{simple_attention_core.1} parent=5 // pred_check_branch
        %316 = sbr.rel (%p313) target = $region36
      $region35: #{simple_attention_core.1} parent=5 // pred_region
        %s317 = ssub.s32 %s24, 1
        %s318 = sand.u32 %s60, 1
        %s319 = scalar_lea.sflag [#allocation3], %s318
        %s320 = sand.u32 %s60, 1
        %s321 = smul.addr %s320, 8
        %s322 = scalar_lea.vmem [#allocation2], %s321
        // Predicated region
        $region37: #{simple_attention_core.1} parent=35 // pred_check
          %p323 = pneg %p73
        $region38: #{simple_attention_core.1} parent=35 // pred_check_branch
          %325 = sbr.rel (%p323) target = $region40
        $region39: #{simple_attention_core.1} parent=35 // pred_region
          %327 = dma.done %s319, 128
        $region40: #{simple_attention_core.1} parent=35 // pred_fallthru
          _
        %s328 = sand.u32 %s29, 1
        %s329 = scalar_lea.sflag [#allocation6], %s328
        %s330 = sand.u32 %s88, 1
        %s331 = smul.addr %s330, 8
        %s332 = scalar_lea.vmem [#allocation5], %s331
        // Predicated region
        $region41: #{simple_attention_core.1} parent=35 // pred_check
          %p333 = pneg %p101
        $region42: #{simple_attention_core.1} parent=35 // pred_check_branch
          %335 = sbr.rel (%p333) target = $region44
        $region43: #{simple_attention_core.1} parent=35 // pred_region
          %337 = dma.done %s329, 128
        $region44: #{simple_attention_core.1} parent=35 // pred_fallthru
          _
        %s338 = sand.u32 %s29, 1
        %s339 = scalar_lea.sflag [#allocation6], %s338
        %s340 = sand.u32 %s116, 1
        %s341 = smul.addr %s340, 8
        %s342 = scalar_lea.vmem [#allocation7], %s341
        // Predicated region
        $region45: #{simple_attention_core.1} parent=35 // pred_check
          %p343 = pneg %p129
        $region46: #{simple_attention_core.1} parent=35 // pred_check_branch
          %345 = sbr.rel (%p343) target = $region48
        $region47: #{simple_attention_core.1} parent=35 // pred_region
          %347 = dma.done %s339, 128
        $region48: #{simple_attention_core.1} parent=35 // pred_fallthru
          _
        %s348 = sand.u32 %s60, 1
        %s349 = scalar_lea.sflag [#allocation3], %s348
        %s350 = sand.u32 %s60, 1
        %s351 = smul.addr %s350, 8
        %s352 = scalar_lea.vmem [#allocation2], %s351
        %p353 = pneg %p73
        %p354 = pneg %p70
        %s355 = sand.u32 %s29, 1
        %s356 = scalar_lea.sflag [#allocation6], %s355
        %s357 = sand.u32 %s88, 1
        %s358 = smul.addr %s357, 8
        %s359 = scalar_lea.vmem [#allocation5], %s358
        %p360 = pneg %p101
        %p361 = pneg %p98
        %s362 = sand.u32 %s29, 1
        %s363 = scalar_lea.sflag [#allocation6], %s362
        %s364 = sand.u32 %s116, 1
        %s365 = smul.addr %s364, 8
        %s366 = scalar_lea.vmem [#allocation7], %s365
        %p367 = pneg %p129
        %p368 = pneg %p126
        %p369 = scmp.lt.s32.totalorder %s34, 1
        %s370 = scalar_select %p369, %s34, 1
        %p371 = scmp.lt.s32.totalorder %s36, 0
        %s372 = scalar_select %p371, %s36, 0
        %s373 = sadd.s32 %s372, %s370
        %s374 = smul.addr %s373, 4
        %s375 = scalar_lea.vmem %s3, %s374
        %p376 = pneg %p157
        %p377 = pneg %p154
        %p378 = pneg %p187
        %p379 = pneg %p184
        %s380 = sand.u32 %s174, 1
        %s381 = scalar_lea.sflag [#allocation4], %s380
        %s382 = sand.u32 %s174, 1
        %s383 = smul.addr %s382, 8
        %s384 = scalar_lea.vmem [#allocation8], %s383
        %p385 = pneg %p217
        %p386 = pneg %p214
        %s387 = sand.u32 %s204, 1
        %s388 = scalar_lea.sflag [#allocation10], %s387
        %s389 = sand.u32 %s204, 1
        %s390 = smul.addr %s389, 8
        %s391 = scalar_lea.vmem [#allocation9], %s390
        %p392 = scmp.lt.s32.totalorder %s34, 1
        %s393 = scalar_select %p392, %s34, 1
        %p394 = scmp.lt.s32.totalorder %s36, 0
        %s395 = scalar_select %p394, %s36, 0
        %s396 = sadd.s32 %s395, %s393
        %s397 = smul.addr %s396, 4
        %s398 = scalar_lea.vmem %s3, %s397
        %v400 = vld [vmem:[%s322] sm:$0xff]
        %v401 = vmul.f32 %v400, 0.088388346
        %v402 = vpack.c.bf16 %v401, %v401
        %v403 = vld [vmem:[%s332] sm:$0xff]
        %v404 = vpack.c.bf16 %v403, %v403
        %v405 = vld [vmem:[%s398] sm:$0xf]
        %v406 = vunpack.c.l.bf16 %v405
        %407 = vmatpush.bf16.xpose.msra.mxu0 0
        %408 = vmatpush.bf16.xpose.msra.mxu0 0
        %409 = vmatpush.bf16.xpose.msra.mxu0 0
        %410 = vmatpush.bf16.xpose.msra.mxu0 0
        %411 = vmatpush.bf16.xpose.msra.mxu0 0
        %412 = vmatpush.bf16.xpose.msra.mxu0 0
        %413 = vmatpush.bf16.xpose.msra.mxu0 0
        %414 = vmatpush.bf16.xpose.msra.mxu0 %v404
        %415 = vmatmul.bf16.gmra.mxu0 %v402
        %v416 = vpop.f32.mrf.mxu0
        %v417 = vadd.f32 %v406, %v416
        %v418 = vpop.f32.mrf.mxu0
        %419 = vdwg.mxu0
        %vm420 = vcmask 64512
        %v421 = vsel %vm420, %v417, -inf
        %422 = vmax.xlane.f32.xlu0 %v421
        %v423 = vpop.xlane.xlu0 %422
        %v424 = vsub.f32 %v417, %v423
        %v425 = vmul.f32 %v424, 1.442695
        %v426 = vpow.pop %v425
        %v427 = vsel %vm420, %v426, 0.0
        %428 = vadd.xlane.f32.xlu0 %v427
        %v429 = vpop.xlane.xlu0 %428
        %v430 = vrcp.pop %v429
        %v431 = vpack.c.bf16 %v426, %v426
        %v432 = vld [vmem:[%s342] sm:$0xff]
        %v433 = vpack.c.bf16 %v432, %v432
        %v435 = vsel %vm420, %v431, 0
        %vm437 = vcmask 1043456
        %v439 = vsel %vm437, %v433, 0
        %441 = vmatpush.bf16.msra.mxu0 0
        %442 = vmatpush.bf16.msra.mxu0 0
        %443 = vmatpush.bf16.msra.mxu0 0
        %444 = vmatpush.bf16.msra.mxu0 0
        %445 = vmatpush.bf16.msra.mxu0 0
        %446 = vmatpush.bf16.msra.mxu0 0
        %447 = vmatpush.bf16.msra.mxu0 0
        %448 = vmatpush.bf16.msra.mxu0 %v439
        %449 = vmatmul.bf16.gmra.mxu0 %v435
        %v450 = vpop.f32.mrf.mxu0
        %v451 = vadd.f32 0.0, %v450
        %v452 = vpop.f32.mrf.mxu0
        %453 = vdwg.mxu0
        %v454 = vmul.f32 %v451, %v430
        %455 = vst [vmem:[%s384] sm:$0xff] %v454
        %v456 = vmul.f32 %v426, %v430
        %457 = vst.msk [vmem:[%s391] sm:$0xff] %vm420, %v456
        %s458 = sand.u32 %s174, 1
        %s459 = scalar_lea.sflag [#allocation4], %s458
        %s460 = sand.u32 %s174, 1
        %s461 = smul.addr %s460, 8
        %s462 = scalar_lea.vmem [#allocation8], %s461
        %s463 = sand.u32 %s204, 1
        %s464 = scalar_lea.sflag [#allocation10], %s463
        %s465 = sand.u32 %s204, 1
        %s466 = smul.addr %s465, 8
        %s467 = scalar_lea.vmem [#allocation9], %s466
        // Predicated region
        $region49: #{simple_attention_core.1} parent=35 // pred_check
          %p468 = pneg %p184
        $region50: #{simple_attention_core.1} parent=35 // pred_check_branch
          %470 = sbr.rel (%p468) target = $region52
        $region51: #{simple_attention_core.1} parent=35 // pred_region
          %472 = vsyncadd %s459, 0
          %s473 = smul.addr %s36, 2
          %s474 = sadd.s32 %s35, %s473
          %s475 = smul.addr %s34, 2
          %s476 = sadd.s32 %s474, %s475
          %s477 = smul.addr %s476, 8
          %s478 = scalar_lea.hbm %s4, %s477
          %s480 = sshll.u32 %s462, 4
          %s481 = int_to_ptr.vmem [resolvable:$true] %s480
          %s482 = sshll.u32 %s478, 4
          %s483 = int_to_ptr.hbm [resolvable:$true] %s482
          %485 = dma.vmem_to_hbm [thread:$0]  %s481, 128, %s483, %s459
        $region52: #{simple_attention_core.1} parent=35 // pred_fallthru
          _
        // Predicated region
        $region53: #{simple_attention_core.1} parent=35 // pred_check
          %p486 = pneg %p214
        $region54: #{simple_attention_core.1} parent=35 // pred_check_branch
          %488 = sbr.rel (%p486) target = $region56
        $region55: #{simple_attention_core.1} parent=35 // pred_region
          %490 = vsyncadd %s464, 0
          %s491 = sadd.s32 %s36, %s35
          %s492 = smul.addr %s34, 2
          %s493 = sadd.s32 %s491, %s492
          %s494 = smul.addr %s493, 8
          %s495 = scalar_lea.hbm %s5, %s494
          %s497 = sshll.u32 %s467, 4
          %s498 = int_to_ptr.vmem [resolvable:$true] %s497
          %s499 = sshll.u32 %s495, 4
          %s500 = int_to_ptr.hbm [resolvable:$true] %s499
          %502 = dma.vmem_to_hbm [thread:$0]  %s498, 128, %s500, %s464
        $region56: #{simple_attention_core.1} parent=35 // pred_fallthru
          _
      $region36: #{simple_attention_core.1} parent=5 // pred_fallthru
        _
      %p503 = scmp.le.s32.totalorder 2, %s24
      // Predicated region
      $region57: #{simple_attention_core.1} parent=5 // pred_check
        %p504 = pneg %p503
      $region58: #{simple_attention_core.1} parent=5 // pred_check_branch
        %506 = sbr.rel (%p504) target = $region60
      $region59: #{simple_attention_core.1} parent=5 // pred_region
        %s507 = ssub.s32 %s24, 2
        // Predicated region
        $region61: #{simple_attention_core.1} parent=59 // pred_check
          %p508 = pneg %p190
        $region62: #{simple_attention_core.1} parent=59 // pred_check_branch
          %510 = sbr.rel (%p508) target = $region64
        $region63: #{simple_attention_core.1} parent=59 // pred_region
          %s511 = sand.u32 %s175, 1
          %s512 = scalar_lea.sflag [#allocation4], %s511
          %s513 = sand.u32 %s175, 1
          %s514 = smul.addr %s513, 8
          %s515 = scalar_lea.vmem [#allocation8], %s514
          %517 = dma.done %s512, 128
        $region64: #{simple_attention_core.1} parent=59 // pred_fallthru
          _
        // Predicated region
        $region65: #{simple_attention_core.1} parent=59 // pred_check
          %p518 = pneg %p220
        $region66: #{simple_attention_core.1} parent=59 // pred_check_branch
          %520 = sbr.rel (%p518) target = $region68
        $region67: #{simple_attention_core.1} parent=59 // pred_region
          %s521 = sand.u32 %s205, 1
          %s522 = scalar_lea.sflag [#allocation10], %s521
          %s523 = sand.u32 %s205, 1
          %s524 = smul.addr %s523, 8
          %s525 = scalar_lea.vmem [#allocation9], %s524
          %527 = dma.done %s522, 128
        $region68: #{simple_attention_core.1} parent=59 // pred_fallthru
          _
      $region60: #{simple_attention_core.1} parent=5 // pred_fallthru
        _
    $region6: #{simple_attention_core.1} parent=1 // loop_footer
      %s28 = sadd.s32 1, %s24
    $region7: #{simple_attention_core.1} parent=1 // loop_footer_branch
      %23 = sbr.rel target = $region3
    $region8: #{simple_attention_core.1} parent=1 // loop_exit
      _
    %528 = vsyncpa [#allocation3], 1
    %s529 = scalar_lea.sflag [#allocation3], 1
    %530 = vsyncpa %s529, 1
    %531 = vsyncpa [#allocation6], 1
    %s532 = scalar_lea.sflag [#allocation6], 1
    %533 = vsyncpa %s532, 1
    %534 = vsyncpa [#allocation4], 1
    %s535 = scalar_lea.sflag [#allocation4], 1
    %536 = vsyncpa %s535, 1
    %537 = vsyncpa [#allocation10], 1
    %s538 = scalar_lea.sflag [#allocation10], 1
    %539 = vsyncpa %s538, 1

</llo_original>
